<compile_context>
chip_gen: v7x
topology: tpu7x:2x2x1
jax: 0.10.0
libtpu: 0.0.40
codegen_flags: <defaults>
</compile_context>

<pallas_src>
import functools

import jax
import jax.numpy as jnp
from jax import lax
from jax.experimental import pallas as pl
from jax.experimental.pallas import tpu as pltpu

_NEG = -1e30  # finite "minus infinity" for class padding (avoids inf-inf NaNs)


def _round_up(x, m):
    return (x + m - 1) // m * m


def _ce_kernel(logits_ref, labels_ref, nll_ref, m_sc, l_sc, p_sc):
    """One (TILE_N, TILE_C) block of an online-logsumexp cross entropy.

    logits_ref : (TILE_N, TILE_C) input block (any float dtype)
    labels_ref : (TILE_N, 1) int32 class indices (-1 for padded rows)
    nll_ref    : (TILE_N, 1) f32 per-row negative log-likelihood (output)
    m_sc/l_sc/p_sc : (TILE_N, 1) f32 scratch: running max / running exp-sum /
                     accumulated picked label logit.
    """
    j = pl.program_id(1)
    n_c_tiles = pl.num_programs(1)

    @pl.when(j == 0)
    def _():
        m_sc[...] = jnp.full_like(m_sc, -jnp.inf)
        l_sc[...] = jnp.zeros_like(l_sc)
        p_sc[...] = jnp.zeros_like(p_sc)

    x = logits_ref[...].astype(jnp.float32)        # (TILE_N, TILE_C)
    labels = labels_ref[...]                       # (TILE_N, 1) int32
    tile_c = x.shape[1]

    # pick the label logit if it lives in this class tile (one-hot dot, no gather)
    col = j * tile_c + lax.broadcasted_iota(jnp.int32, x.shape, 1)
    onehot = (col == labels).astype(jnp.float32)
    p_sc[...] += jnp.sum(x * onehot, axis=-1, keepdims=True)

    # online logsumexp update
    m_old = m_sc[...]
    m_new = jnp.maximum(m_old, jnp.max(x, axis=-1, keepdims=True))
    alpha = jnp.exp(m_old - m_new)
    l_sc[...] = alpha * l_sc[...] + jnp.sum(jnp.exp(x - m_new), axis=-1,
                                            keepdims=True)
    m_sc[...] = m_new

    @pl.when(j == n_c_tiles - 1)
    def _():
        valid = (labels >= 0).astype(jnp.float32)  # padded rows contribute 0
        nll = (m_sc[...] + jnp.log(l_sc[...]) - p_sc[...]) * valid
        nll_ref[...] = nll


@functools.partial(jax.jit, static_argnames=())
def cross_entropy_loss(logits, labels):
    """Pallas TPU cross-entropy: logits [N, C] float, labels [N] int. Mean NLL."""
    n, c = logits.shape

    # tile sizes: rows multiple of 8 (sublanes), classes multiple of 128 (lanes)
    tile_n = min(512, _round_up(n, 8))
    tile_c = min(2048, _round_up(c, 128))
    n_pad = _round_up(n, tile_n)
    c_pad = _round_up(c, tile_c)

    # pad class axis with a huge negative (never wins max, exp -> 0);
    # pad batch axis rows the same way and mark them with label = -1.
    logits_p = jnp.pad(logits, ((0, n_pad - n), (0, c_pad - c)),
                       constant_values=_NEG)
    labels_p = jnp.pad(labels.astype(jnp.int32), (0, n_pad - n),
                       constant_values=-1).reshape(n_pad, 1)

    grid = (n_pad // tile_n, c_pad // tile_c)
    itemsize = jnp.dtype(logits.dtype).itemsize

    nll = pl.pallas_call(
        _ce_kernel,
        out_shape=jax.ShapeDtypeStruct((n_pad, 1), jnp.float32),
        grid_spec=pltpu.PrefetchScalarGridSpec(
            num_scalar_prefetch=0,
            grid=grid,
            in_specs=[
                pl.BlockSpec((tile_n, tile_c), lambda i, j: (i, j)),
                pl.BlockSpec((tile_n, 1), lambda i, j: (i, 0)),
            ],
            out_specs=pl.BlockSpec((tile_n, 1), lambda i, j: (i, 0)),
            scratch_shapes=[
                pltpu.VMEM((tile_n, 1), jnp.float32),  # running max m
                pltpu.VMEM((tile_n, 1), jnp.float32),  # running sum l
                pltpu.VMEM((tile_n, 1), jnp.float32),  # picked label logit
            ],
        ),
        compiler_params=pltpu.CompilerParams(
            dimension_semantics=("parallel", "arbitrary"),
            vmem_limit_bytes=64 << 20,
        ),
        cost_estimate=pl.CostEstimate(
            flops=5 * n_pad * c_pad,
            transcendentals=n_pad * c_pad,
            bytes_accessed=n_pad * c_pad * itemsize + n_pad * 8,
        ),
    )(logits_p, labels_p)

    # TODO(synk): torch's ignore_index=-100 semantics (excluding ignored rows
    # from the denominator) are not implemented; callers must pass valid labels.
    return jnp.sum(nll) / jnp.float32(n)


if __name__ == "__main__":
    key = jax.random.PRNGKey(0)
    k_logits, k_labels = jax.random.split(key)

    N, C = 8, 32
    logits = jax.random.normal(k_logits, (N, C), dtype=jnp.float32)
    labels = jax.random.randint(k_labels, (N,), 0, C, dtype=jnp.int32)

    loss = cross_entropy_loss(logits, labels)
    jax.block_until_ready(loss)

    # pure-JAX reference (same semantics as torch.nn.CrossEntropyLoss, mean)
    logp_ref = jax.nn.log_softmax(logits, axis=-1)
    ref = -jnp.mean(jnp.take_along_axis(logp_ref, labels[:, None], axis=-1))
    assert jnp.allclose(loss, ref, atol=1e-5, rtol=1e-5), (loss, ref)

    print("KERNEL_OK")
</pallas_src>

<mosaic_0001>
module attributes {stable_mosaic.version = 11 : i64} {
  func.func @_ce_kernel(%arg0: i32, %arg1: i32, %arg2: memref<8x128xf32, #tpu.memory_space<vmem>>, %arg3: memref<8x1xi32, #tpu.memory_space<vmem>>, %arg4: memref<8x1xf32, #tpu.memory_space<vmem>>, %arg5: memref<8x1xf32, #tpu.memory_space<vmem>>, %arg6: memref<8x1xf32, #tpu.memory_space<vmem>>, %arg7: memref<8x1xf32, #tpu.memory_space<vmem>>) attributes {dimension_semantics = [#tpu.dimension_semantics<parallel>, #tpu.dimension_semantics<arbitrary>], iteration_bounds = array<i64: 1, 1>, scalar_prefetch = 0 : i64, scratch_operands = 3 : i64, tpu.core_type = #tpu.core_type<tc>, window_params = [{transform_indices = @transform_0, window_bounds = array<i64: 8, 128>}, {transform_indices = @transform_1, window_bounds = array<i64: 8, 1>}, {transform_indices = @transform_2, window_bounds = array<i64: 8, 1>}]} {
    %c0_i32 = arith.constant 0 : i32
    %0 = arith.cmpi eq, %arg1, %c0_i32 : i32
    %1 = arith.extui %0 : i1 to i32
    %c0_i32_0 = arith.constant 0 : i32
    %2 = arith.cmpi ne, %1, %c0_i32_0 : i32
    scf.if %2 {
      %cst_20 = arith.constant 0xFF800000 : f32
      %38 = vector.broadcast %cst_20 : f32 to vector<8x1xf32>
      %c0_21 = arith.constant 0 : index
      %c0_22 = arith.constant 0 : index
      %39 = vector.load %arg5[%c0_21, %c0_22] : memref<8x1xf32, #tpu.memory_space<vmem>>, vector<8x1xf32>
      tpu.vector_store %arg5[%c0_21, %c0_22], %38 {strides = array<i32>} : memref<8x1xf32, #tpu.memory_space<vmem>>, vector<8x1xf32>,
      %cst_23 = arith.constant 0.000000e+00 : f32
      %40 = vector.broadcast %cst_23 : f32 to vector<8x1xf32>
      %c0_24 = arith.constant 0 : index
      %c0_25 = arith.constant 0 : index
      %41 = vector.load %arg6[%c0_24, %c0_25] : memref<8x1xf32, #tpu.memory_space<vmem>>, vector<8x1xf32>
      tpu.vector_store %arg6[%c0_24, %c0_25], %40 {strides = array<i32>} : memref<8x1xf32, #tpu.memory_space<vmem>>, vector<8x1xf32>,
      %cst_26 = arith.constant 0.000000e+00 : f32
      %42 = vector.broadcast %cst_26 : f32 to vector<8x1xf32>
      %c0_27 = arith.constant 0 : index
      %c0_28 = arith.constant 0 : index
      %43 = vector.load %arg7[%c0_27, %c0_28] : memref<8x1xf32, #tpu.memory_space<vmem>>, vector<8x1xf32>
      tpu.vector_store %arg7[%c0_27, %c0_28], %42 {strides = array<i32>} : memref<8x1xf32, #tpu.memory_space<vmem>>, vector<8x1xf32>,
    } else {
    }
    %c0 = arith.constant 0 : index
    %c0_1 = arith.constant 0 : index
    %3 = vector.load %arg2[%c0, %c0_1] : memref<8x128xf32, #tpu.memory_space<vmem>>, vector<8x128xf32>
    %c0_2 = arith.constant 0 : index
    %c0_3 = arith.constant 0 : index
    %4 = vector.load %arg3[%c0_2, %c0_3] : memref<8x1xi32, #tpu.memory_space<vmem>>, vector<8x1xi32>
    %c128_i32 = arith.constant 128 : i32
    %5 = arith.muli %arg1, %c128_i32 : i32
    %6 = tpu.iota {dimensions = array<i32: 1>} : vector<8x128xi32>
    %7 = vector.broadcast %5 : i32 to vector<8x128xi32>
    %8 = arith.addi %7, %6 : vector<8x128xi32>
    %9 = vector.broadcast %4 : vector<8x1xi32> to vector<8x128xi32>
    %10 = arith.cmpi eq, %8, %9 : vector<8x128xi32>
    %11 = arith.extui %10 : vector<8x128xi1> to vector<8x128xi32>
    %12 = arith.sitofp %11 : vector<8x128xi32> to vector<8x128xf32>
    %c0_4 = arith.constant 0 : index
    %c0_5 = arith.constant 0 : index
    %13 = vector.load %arg7[%c0_4, %c0_5] : memref<8x1xf32, #tpu.memory_space<vmem>>, vector<8x1xf32>
    %14 = arith.mulf %3, %12 : vector<8x128xf32>
    %cst = arith.constant dense<0.000000e+00> : vector<8xf32>
    %15 = vector.multi_reduction <add>, %14, %cst [1] : vector<8x128xf32> to vector<8xf32>
    %16 = vector.shape_cast %15 : vector<8xf32> to vector<8x1xf32>
    %17 = arith.addf %13, %16 : vector<8x1xf32>
    %c0_6 = arith.constant 0 : index
    %c0_7 = arith.constant 0 : index
    %18 = vector.load %arg7[%c0_6, %c0_7] : memref<8x1xf32, #tpu.memory_space<vmem>>, vector<8x1xf32>
    tpu.vector_store %arg7[%c0_6, %c0_7], %17 {strides = array<i32>} : memref<8x1xf32, #tpu.memory_space<vmem>>, vector<8x1xf32>,
    %c0_8 = arith.constant 0 : index
    %c0_9 = arith.constant 0 : index
    %19 = vector.load %arg5[%c0_8, %c0_9] : memref<8x1xf32, #tpu.memory_space<vmem>>, vector<8x1xf32>
    %cst_10 = arith.constant dense<0xFF800000> : vector<8xf32>
    %20 = vector.multi_reduction <maximumf>, %3, %cst_10 [1] : vector<8x128xf32> to vector<8xf32>
    %21 = vector.shape_cast %20 : vector<8xf32> to vector<8x1xf32>
    %22 = arith.maximumf %19, %21 : vector<8x1xf32>
    %23 = arith.subf %19, %22 : vector<8x1xf32>
    %24 = math.exp %23 : vector<8x1xf32>
    %c0_11 = arith.constant 0 : index
    %c0_12 = arith.constant 0 : index
    %25 = vector.load %arg6[%c0_11, %c0_12] : memref<8x1xf32, #tpu.memory_space<vmem>>, vector<8x1xf32>
    %26 = arith.mulf %24, %25 : vector<8x1xf32>
    %27 = vector.broadcast %22 : vector<8x1xf32> to vector<8x128xf32>
    %28 = arith.subf %3, %27 : vector<8x128xf32>
    %29 = math.exp %28 : vector<8x128xf32>
    %cst_13 = arith.constant dense<0.000000e+00> : vector<8xf32>
    %30 = vector.multi_reduction <add>, %29, %cst_13 [1] : vector<8x128xf32> to vector<8xf32>
    %31 = vector.shape_cast %30 : vector<8xf32> to vector<8x1xf32>
    %32 = arith.addf %26, %31 : vector<8x1xf32>
    %c0_14 = arith.constant 0 : index
    %c0_15 = arith.constant 0 : index
    %33 = vector.load %arg6[%c0_14, %c0_15] : memref<8x1xf32, #tpu.memory_space<vmem>>, vector<8x1xf32>
    tpu.vector_store %arg6[%c0_14, %c0_15], %32 {strides = array<i32>} : memref<8x1xf32, #tpu.memory_space<vmem>>, vector<8x1xf32>,
    %c0_16 = arith.constant 0 : index
    %c0_17 = arith.constant 0 : index
    %34 = vector.load %arg5[%c0_16, %c0_17] : memref<8x1xf32, #tpu.memory_space<vmem>>, vector<8x1xf32>
    tpu.vector_store %arg5[%c0_16, %c0_17], %22 {strides = array<i32>} : memref<8x1xf32, #tpu.memory_space<vmem>>, vector<8x1xf32>,
    %c0_i32_18 = arith.constant 0 : i32
    %35 = arith.cmpi eq, %arg1, %c0_i32_18 : i32
    %36 = arith.extui %35 : i1 to i32
    %c0_i32_19 = arith.constant 0 : i32
    %37 = arith.cmpi ne, %36, %c0_i32_19 : i32
    scf.if %37 {
      %c0_i32_20 = arith.constant 0 : i32
      %38 = vector.broadcast %c0_i32_20 : i32 to vector<8x1xi32>
      %39 = arith.cmpi sge, %4, %38 : vector<8x1xi32>
      %40 = arith.extui %39 : vector<8x1xi1> to vector<8x1xi32>
      %41 = arith.sitofp %40 : vector<8x1xi32> to vector<8x1xf32>
      %c0_21 = arith.constant 0 : index
      %c0_22 = arith.constant 0 : index
      %42 = vector.load %arg5[%c0_21, %c0_22] : memref<8x1xf32, #tpu.memory_space<vmem>>, vector<8x1xf32>
      %c0_23 = arith.constant 0 : index
      %c0_24 = arith.constant 0 : index
      %43 = vector.load %arg6[%c0_23, %c0_24] : memref<8x1xf32, #tpu.memory_space<vmem>>, vector<8x1xf32>
      %44 = math.log %43 : vector<8x1xf32>
      %45 = arith.addf %42, %44 : vector<8x1xf32>
      %c0_25 = arith.constant 0 : index
      %c0_26 = arith.constant 0 : index
      %46 = vector.load %arg7[%c0_25, %c0_26] : memref<8x1xf32, #tpu.memory_space<vmem>>, vector<8x1xf32>
      %47 = arith.subf %45, %46 : vector<8x1xf32>
      %48 = arith.mulf %47, %41 : vector<8x1xf32>
      %c0_27 = arith.constant 0 : index
      %c0_28 = arith.constant 0 : index
      %49 = vector.load %arg4[%c0_27, %c0_28] : memref<8x1xf32, #tpu.memory_space<vmem>>, vector<8x1xf32>
      tpu.vector_store %arg4[%c0_27, %c0_28], %48 {strides = array<i32>} : memref<8x1xf32, #tpu.memory_space<vmem>>, vector<8x1xf32>,
    } else {
    }
    return
  }
  func.func @transform_0(%arg0: i32, %arg1: i32) -> (i32, i32) {
    %c0_i32 = arith.constant 0 : i32
    return %arg0, %arg1 : i32, i32
  }
  func.func @transform_1(%arg0: i32, %arg1: i32) -> (i32, i32) {
    %c0_i32 = arith.constant 0 : i32
    %c0_i32_0 = arith.constant 0 : i32
    return %arg0, %c0_i32 : i32, i32
  }
  func.func @transform_2(%arg0: i32, %arg1: i32) -> (i32, i32) {
    %c0_i32 = arith.constant 0 : i32
    %c0_i32_0 = arith.constant 0 : i32
    return %arg0, %c0_i32 : i32, i32
  }
}

</mosaic_0001>

<llo_original>
// kernel: cross_entropy_loss.1
$region0: #{cross_entropy_loss.1}
  #allocation0 [shape = 'u32[]', space=smem, size = 0x4, offset = 0x4, fixed_abs, tag = 'smem constant byte address 0x4 - core index']
  #allocation1 [shape = 'u32[144,128]{1,0:T(1,128)}', space=vmem, size = 0x12000, scoped, tag = 'internal scratch']
  #allocation2 [shape = 'f32[8,1]{1,0:T(8,128)}', space=vmem, size = 0x1000, scoped, tag = 'scratch operand']
  #allocation3 [shape = 'f32[8,1]{1,0:T(8,128)}', space=vmem, size = 0x1000, scoped, tag = 'scratch operand']
  #allocation4 [shape = 'f32[8,1]{1,0:T(8,128)}', space=vmem, size = 0x1000, scoped, tag = 'scratch operand']
  %s0 = inlined_call_operand.hbm [shape: f32[8,128], index: 0, kind: input, shape index: {}]
  %s1 = inlined_call_operand.hbm [shape: s32[8,1], index: 1, kind: input, shape index: {}]
  %s2 = inlined_call_operand.hbm [shape: f32[8,1], index: 2, kind: output, shape index: {}]
  %s3 = sld [smem:[#allocation0]]
  $region34: #{cross_entropy_loss.1} parent=0
    _
  %s5 = ssub.s32 1, %s3
  %s6 = scalar_select 0, %s5, %s3
  $region1: #{cross_entropy_loss.1} parent=0
    #allocation5 [shape = 'u8[4096]{0}', space=vmem, size = 0x1000, scoped, tag = 'input window, operand 0, single buffered']
    #allocation6 [shape = 's32[1]{0}', space=sflag, size = 0x4, scoped, tag = 'scoped memory for cross_entropy_loss.1']
    #allocation7 [shape = 's32[1]{0}', space=sflag, size = 0x4, scoped, tag = 'scoped memory for cross_entropy_loss.1']
    #allocation8 [shape = 'u8[4096]{0}', space=vmem, size = 0x1000, scoped, tag = 'input window, operand 1, single buffered']
    #allocation9 [shape = 's32[1]{0}', space=sflag, size = 0x4, scoped, tag = 'scoped memory for cross_entropy_loss.1']
    #allocation10 [shape = 'u8[4096]{0}', space=vmem, size = 0x1000, scoped, tag = 'output window, operand 0, single buffered']
    %7 = vsyncpa [#allocation6], 0
    %8 = vsyncpa [#allocation9], 0
    %9 = vsyncpa [#allocation7], 0
    // Predicated region
    $region2: #{cross_entropy_loss.1} parent=1 // pred_check
      _
    $region3: #{cross_entropy_loss.1} parent=1 // pred_check_branch
      %11 = sbr.rel (0) target = $region5
    $region4: #{cross_entropy_loss.1} parent=1 // pred_region
      %s13 = ssub.s32 128, 128
      %14 = vsyncadd [#allocation6], %s13
      %s16 = sshll.u32 [#allocation5], 4
      %s17 = int_to_ptr.vmem [resolvable:$true] %s16
      %19 = dma.hbm_to_vmem [thread:$0]  %s0, 128, %s17, [#allocation6]
    $region5: #{cross_entropy_loss.1} parent=1 // pred_fallthru
      _
    // Predicated region
    $region6: #{cross_entropy_loss.1} parent=1 // pred_check
      _
    $region7: #{cross_entropy_loss.1} parent=1 // pred_check_branch
      %21 = sbr.rel (0) target = $region9
    $region8: #{cross_entropy_loss.1} parent=1 // pred_region
      %s23 = ssub.s32 128, 128
      %24 = vsyncadd [#allocation9], %s23
      %s26 = sshll.u32 [#allocation8], 4
      %s27 = int_to_ptr.vmem [resolvable:$true] %s26
      %29 = dma.hbm_to_vmem [thread:$0]  %s1, 128, %s27, [#allocation9]
    $region9: #{cross_entropy_loss.1} parent=1 // pred_fallthru
      _
    // Predicated region
    $region10: #{cross_entropy_loss.1} parent=1 // pred_check
      _
    $region11: #{cross_entropy_loss.1} parent=1 // pred_check_branch
      %31 = sbr.rel (0) target = $region13
    $region12: #{cross_entropy_loss.1} parent=1 // pred_region
      %32 = dma.done [#allocation6], 128
    $region13: #{cross_entropy_loss.1} parent=1 // pred_fallthru
      _
    // Predicated region
    $region14: #{cross_entropy_loss.1} parent=1 // pred_check
      _
    $region15: #{cross_entropy_loss.1} parent=1 // pred_check_branch
      %34 = sbr.rel (0) target = $region17
    $region16: #{cross_entropy_loss.1} parent=1 // pred_region
      %35 = dma.done [#allocation9], 128
    $region17: #{cross_entropy_loss.1} parent=1 // pred_fallthru
      _
    %p36 = scmp.eq.s32.totalorder 0, 0
    // Predicated region
    $region18: #{cross_entropy_loss.1} parent=1 // pred_check
      %p37 = pneg %p36
    $region19: #{cross_entropy_loss.1} parent=1 // pred_check_branch
      %39 = sbr.rel (%p37) target = $region21
    $region20: #{cross_entropy_loss.1} parent=1 // pred_region
      %vm40 = vcmask 7168
      %41 = vst.msk [vmem:[#allocation2] sm:$0xff] %vm40, -inf
      %42 = vst.msk [vmem:[#allocation3] sm:$0xff] %vm40, 0.0
      %43 = vst.msk [vmem:[#allocation4] sm:$0xff] %vm40, 0.0
    $region21: #{cross_entropy_loss.1} parent=1 // pred_fallthru
      _
    %v44 = vld [vmem:[#allocation5] sm:$0xff]
    %v45 = vld [vmem:[#allocation8] sm:$0xff]
    %s46 = smul.u32 0, 128
    %v47 = vlaneseq
    %v48 = vand.u32 %v47, 127
    %v49 = vstv %s46
    %v50 = vadd.s32 %v49, %v48
    %51 = vset.pattern.permute.xlu0 0
    %52 = vperm.xlu0 %51, %v45
    %v53 = vpop.permute.xlu0 %52
    %vm54 = vcmp.eq.s32.totalorder %v50, %v53
    %v55 = vsel %vm54, 1, 0
    %v56 = vcvt.s32.f32 %v55
    %v57 = vld [vmem:[#allocation4] sm:$0xff]
    %v58 = vmul.f32 %v44, %v56
    %59 = vadd.xlane.f32.xlu0 %v58
    %v60 = vpop.xlane.xlu0 %59
    %v61 = vadd.f32 %v57, %v60
    %vm62 = vcmask 7168
    %63 = vst.msk [vmem:[#allocation4] sm:$0xff] %vm62, %v61
    %v64 = vld [vmem:[#allocation2] sm:$0xff]
    %65 = vmax.xlane.f32.xlu0 %v44
    %v66 = vpop.xlane.xlu0 %65
    %v67 = vmax.f32 %v64, %v66
    %v68 = vsub.f32 %v64, %v67
    %v69 = vmul.f32 %v68, 1.442695
    %v70 = vpow.pop %v69
    %v71 = vld [vmem:[#allocation3] sm:$0xff]
    %v72 = vmul.f32 %v70, %v71
    %74 = vset.pattern.permute.xlu0 0
    %75 = vperm.xlu0 %74, %v67
    %v76 = vpop.permute.xlu0 %75
    %v78 = vsub.f32 %v44, %v76
    %v79 = vmul.f32 %v78, 1.442695
    %v80 = vpow.pop %v79
    %81 = vadd.xlane.f32.xlu0 %v80
    %v82 = vpop.xlane.xlu0 %81
    %v83 = vadd.f32 %v72, %v82
    %84 = vst.msk [vmem:[#allocation3] sm:$0xff] %vm62, %v83
    %85 = vst.msk [vmem:[#allocation2] sm:$0xff] %vm62, %v67
    // Predicated region
    $region22: #{cross_entropy_loss.1} parent=1 // pred_check
      %p86 = pneg %p36
    $region23: #{cross_entropy_loss.1} parent=1 // pred_check_branch
      %88 = sbr.rel (%p86) target = $region25
    $region24: #{cross_entropy_loss.1} parent=1 // pred_region
      %vm89 = vcmp.ge.s32.totalorder %v45, 0
      %v90 = vsel %vm89, 1, 0
      %v91 = vcvt.s32.f32 %v90
      %v92 = vld [vmem:[#allocation2] sm:$0xff]
      %v93 = vld [vmem:[#allocation3] sm:$0xff]
      %v94 = vlog2.pop %v93
      %v95 = vmul.f32 %v94, 0.6931472
      %v96 = vadd.f32 %v92, %v95
      %v97 = vld [vmem:[#allocation4] sm:$0xff]
      %v98 = vsub.f32 %v96, %v97
      %v99 = vmul.f32 %v98, %v91
      %100 = vst.msk [vmem:[#allocation10] sm:$0xff] %vm62, %v99
    $region25: #{cross_entropy_loss.1} parent=1 // pred_fallthru
      _
    // Predicated region
    $region26: #{cross_entropy_loss.1} parent=1 // pred_check
      _
    $region27: #{cross_entropy_loss.1} parent=1 // pred_check_branch
      %102 = sbr.rel (0) target = $region29
    $region28: #{cross_entropy_loss.1} parent=1 // pred_region
      %s104 = ssub.s32 128, 128
      %105 = vsyncadd [#allocation7], %s104
      %s107 = sshll.u32 [#allocation10], 4
      %s108 = int_to_ptr.vmem [resolvable:$true] %s107
      %110 = dma.vmem_to_hbm [thread:$0]  %s108, 128, %s2, [#allocation7]
    $region29: #{cross_entropy_loss.1} parent=1 // pred_fallthru
      _
    // Predicated region
    $region30: #{cross_entropy_loss.1} parent=1 // pred_check
      _
    $region31: #{cross_entropy_loss.1} parent=1 // pred_check_branch
      %112 = sbr.rel (0) target = $region33
    $region32: #{cross_entropy_loss.1} parent=1 // pred_region
      %113 = dma.done [#allocation7], 128
    $region33: #{cross_entropy_loss.1} parent=1 // pred_fallthru
      _
    %114 = vsyncpa [#allocation6], 1
    %115 = vsyncpa [#allocation9], 1
    %116 = vsyncpa [#allocation7], 1

</llo_original>
